<compile_context>
chip_gen: v6e
topology: v6e:2x2x1
jax: 0.10.0
libtpu: 0.0.40
codegen_flags: <defaults>
</compile_context>

<pallas_src>
import jax
import jax.numpy as jnp
from jax.experimental import pallas as pl
from jax.experimental.pallas import tpu as pltpu


# ---------------------------------------------------------------------------
# Kernel
# ---------------------------------------------------------------------------
def _cox_matvec_kernel(x_ref, w_ref, o_ref):
    """One row-tile of risk scores: o = sum(x * w, axis=-1).

    x_ref: (bm, F) tile of the design matrix (VMEM, streamed from HBM)
    w_ref: (1, F)  weight row (VMEM, same block every grid step)
    o_ref: (bm, 1) tile of risk scores
    """
    # VPU broadcast-multiply + lane reduction, accumulated in f32.  For f32
    # inputs the casts are no-ops; output writeback is only N*4 bytes so the
    # (bm, 1) store stays negligible vs. the N*F*4 read stream.
    o_ref[...] = jnp.sum(
        x_ref[...].astype(jnp.float32) * w_ref[...].astype(jnp.float32),
        axis=-1,
        keepdims=True,
    ).astype(o_ref.dtype)


# ---------------------------------------------------------------------------
# Tile-size selection / wrapper
# ---------------------------------------------------------------------------
_MIN_TILE_BYTES = 1 * 1024 * 1024   # don't shrink X tiles below ~1 MiB (roofline plateau)
_TARGET_STEPS = 8                   # >= 4 steps per TensorCore on v7x, even split


def _round_up(x, m):
    return ((x + m - 1) // m) * m


def _round_down8(x):
    return max((x // 8) * 8, 8)


def _vmem_budgets():
    """(vmem_limit_bytes, per-buffer X-tile budget), generation aware."""
    cap = None
    try:
        cap = getattr(pltpu.get_tpu_info(), "vmem_capacity_bytes", None)
    except Exception:
        cap = None
    if cap is not None and int(cap) >= 96 * 1024 * 1024:
        # v5e / v6e: 128 MiB VMEM -> larger scoped limit and tile budget.
        return 64 * 1024 * 1024, 24 * 1024 * 1024
    # v7x (64 MiB per TC) or unknown: conservative budget.  The pipeline
    # double-buffers the X tile, so 2 x 12 MiB + weight/out stays well inside
    # the 32 MiB scoped request.
    return 32 * 1024 * 1024, 12 * 1024 * 1024


def _select_bm(N, F, itemsize, tile_budget_bytes):
    """Row-tile size: VMEM-budgeted, >= ~1 MiB, ~_TARGET_STEPS balanced steps."""
    row_bytes = max(F * itemsize, 1)
    bm_cap = _round_down8(tile_budget_bytes // row_bytes)   # VMEM-budget cap
    n_rounded = _round_up(N, 8)

    # Tiny / single-block problems: one block, no pipeline, no ragged tail.
    if n_rounded <= 8 or n_rounded * row_bytes <= _MIN_TILE_BYTES:
        return min(n_rounded, bm_cap)

    # Large problems: aim for _TARGET_STEPS steps, but keep tiles >= ~1 MiB and
    # within the VMEM budget.
    bm_floor = _round_down8(_MIN_TILE_BYTES // row_bytes)
    bm = _round_up(pl.cdiv(N, _TARGET_STEPS), 8)
    bm = max(bm, bm_floor)
    bm = min(bm, bm_cap, n_rounded)

    # Balanced megacore split on v7x: prefer an even step count (harmless on
    # single-TC v5e/v6e).
    n_steps = pl.cdiv(N, bm)
    if n_steps > 2 and n_steps % 2 == 1:
        bm = max(_round_up(pl.cdiv(N, n_steps + 1), 8), 8)
    return bm


def cox_forward(x: jax.Array, w_row: jax.Array, *, bm: int | None = None) -> jax.Array:
    """Compute risk scores (log hazard ratio) = x @ w_row.T.

    x:     (N, F) design matrix.
    w_row: (1, F) weight, same layout as the PyTorch nn.Linear(n_features, 1) weight.
    returns: (N, 1).
    """
    N, F = x.shape
    assert w_row.shape == (1, F)
    out_dtype = x.dtype
    itemsize = jnp.dtype(x.dtype).itemsize

    vmem_limit_bytes, tile_budget = _vmem_budgets()
    if bm is None:
        bm = _select_bm(N, F, itemsize, tile_budget)
    else:
        bm = max(_round_up(bm, 8), 8)

    n_steps = pl.cdiv(N, bm)

    cost = pl.CostEstimate(
        flops=2 * N * F,
        transcendentals=0,
        bytes_accessed=itemsize * (N * F + F + N),
    )

    # No wrapper-side padding: out_shape is (N, 1); the final (ragged) block is
    # masked on store by Pallas, so X is read from HBM exactly once.
    out = pl.pallas_call(
        _cox_matvec_kernel,
        out_shape=jax.ShapeDtypeStruct((N, 1), out_dtype),
        grid_spec=pltpu.PrefetchScalarGridSpec(
            num_scalar_prefetch=0,
            grid=(n_steps,),
            in_specs=[
                # Streaming row tile of X: the only real HBM traffic.
                pl.BlockSpec((bm, F), lambda i: (i, 0)),
                # Weight row, re-used every step (tiny; double-buffering is noise).
                pl.BlockSpec((1, F), lambda i: (0, 0)),
            ],
            out_specs=pl.BlockSpec((bm, 1), lambda i: (i, 0)),
        ),
        compiler_params=pltpu.CompilerParams(
            dimension_semantics=("parallel",),
            vmem_limit_bytes=vmem_limit_bytes,
        ),
        cost_estimate=cost,
    )(x, w_row)

    return out


# ---------------------------------------------------------------------------
# Module wrapper (forward pass only)
# ---------------------------------------------------------------------------
class NetworkCoxRegressionPallas:
    """Minimal JAX/Pallas port of NetworkCoxRegression (forward pass only).

    Regularization hyper-parameters (alpha, lambda_, Omega/L_sym) only affect
    the training loss, not the forward pass, so they are stored but unused.
    """

    def __init__(self, n_features, alpha=0.0, lambda_=0.01, Omega=None, key=None):
        self.n_features = n_features
        self.alpha = alpha
        self.lambda_ = lambda_
        self.L_sym = None  # Laplacian only enters the training loss.
        if key is None:
            key = jax.random.PRNGKey(0)
        # Deterministic init mimicking PyTorch nn.Linear: U(-1/sqrt(F), 1/sqrt(F)).
        bound = 1.0 / float(n_features) ** 0.5
        # Same layout as PyTorch: weight is (1, n_features).
        self.weight = jax.random.uniform(
            key, (1, n_features), dtype=jnp.float32, minval=-bound, maxval=bound
        )
        # TODO(synk): loss() (Cox partial likelihood + L1 + Laplacian penalty) is
        # training-time only and not part of forward; not implemented as a kernel.

    def __call__(self, x):
        return cox_forward(x, self.weight)


if __name__ == "__main__":
    key = jax.random.PRNGKey(0)
    k_x, k_w = jax.random.split(key)

    # Small demo shapes consistent with the module (batch of samples x features).
    batch = 8
    n_features = 32
    x = jax.random.normal(k_x, (batch, n_features), dtype=jnp.float32)

    model = NetworkCoxRegressionPallas(n_features, alpha=0.5, lambda_=0.01, key=k_w)

    risk_scores = jax.block_until_ready(model(x))
    ref = x @ model.weight.T
    assert risk_scores.shape == (batch, 1)
    assert jnp.allclose(risk_scores, ref, atol=1e-5, rtol=1e-5)

    # Also exercise the multi-step ragged-final-block path (N not divisible by
    # the forced tile) to validate the pad-free masked store.
    x2 = jax.random.normal(jax.random.PRNGKey(1), (1000, 256), dtype=jnp.float32)
    w2 = 0.05 * jax.random.normal(jax.random.PRNGKey(2), (1, 256), dtype=jnp.float32)
    out2 = jax.block_until_ready(cox_forward(x2, w2, bm=128))   # 8 steps, ragged tail
    ref2 = x2 @ w2.T
    assert out2.shape == (1000, 1)
    assert jnp.allclose(out2, ref2, atol=1e-4, rtol=1e-4)

    # And the auto-tiled (single big block) path on the same data.
    out3 = jax.block_until_ready(cox_forward(x2, w2))
    assert jnp.allclose(out3, ref2, atol=1e-4, rtol=1e-4)

    print("KERNEL_OK")
</pallas_src>

<mosaic_0001>
module attributes {stable_mosaic.version = 11 : i64} {
  func.func @_cox_matvec_kernel(%arg0: i32, %arg1: memref<8x32xf32, #tpu.memory_space<vmem>>, %arg2: memref<1x32xf32, #tpu.memory_space<vmem>>, %arg3: memref<8x1xf32, #tpu.memory_space<vmem>>) attributes {dimension_semantics = [#tpu.dimension_semantics<parallel>], iteration_bounds = array<i64: 1>, scalar_prefetch = 0 : i64, scratch_operands = 0 : i64, tpu.core_type = #tpu.core_type<tc>, window_params = [{transform_indices = @transform_0, window_bounds = array<i64: 8, 32>}, {pipeline_mode = #tpu.pipeline_mode<synchronous>, transform_indices = @transform_1, window_bounds = array<i64: 1, 32>}, {transform_indices = @transform_2, window_bounds = array<i64: 8, 1>}]} {
    %c0 = arith.constant 0 : index
    %c0_0 = arith.constant 0 : index
    %0 = vector.load %arg1[%c0, %c0_0] : memref<8x32xf32, #tpu.memory_space<vmem>>, vector<8x32xf32>
    %c0_1 = arith.constant 0 : index
    %c0_2 = arith.constant 0 : index
    %1 = vector.load %arg2[%c0_1, %c0_2] : memref<1x32xf32, #tpu.memory_space<vmem>>, vector<1x32xf32>
    %2 = vector.broadcast %1 : vector<1x32xf32> to vector<8x32xf32>
    %3 = arith.mulf %0, %2 : vector<8x32xf32>
    %cst = arith.constant dense<0.000000e+00> : vector<8xf32>
    %4 = vector.multi_reduction <add>, %3, %cst [1] : vector<8x32xf32> to vector<8xf32>
    %5 = vector.shape_cast %4 : vector<8xf32> to vector<8x1xf32>
    %c0_3 = arith.constant 0 : index
    %c0_4 = arith.constant 0 : index
    %6 = vector.load %arg3[%c0_3, %c0_4] : memref<8x1xf32, #tpu.memory_space<vmem>>, vector<8x1xf32>
    tpu.vector_store %arg3[%c0_3, %c0_4], %5 {strides = array<i32>} : memref<8x1xf32, #tpu.memory_space<vmem>>, vector<8x1xf32>,
    return
  }
  func.func @transform_0(%arg0: i32) -> (i32, i32) {
    %c0_i32 = arith.constant 0 : i32
    %c0_i32_0 = arith.constant 0 : i32
    return %arg0, %c0_i32 : i32, i32
  }
  func.func @transform_1(%arg0: i32) -> (i32, i32) {
    %c0_i32 = arith.constant 0 : i32
    %c0_i32_0 = arith.constant 0 : i32
    %c0_i32_1 = arith.constant 0 : i32
    return %c0_i32, %c0_i32_0 : i32, i32
  }
  func.func @transform_2(%arg0: i32) -> (i32, i32) {
    %c0_i32 = arith.constant 0 : i32
    %c0_i32_0 = arith.constant 0 : i32
    return %arg0, %c0_i32 : i32, i32
  }
}

</mosaic_0001>

<llo_original>
// kernel: tpu_custom_call.1
$region0: #{tpu_custom_call.1}
  #allocation0 [shape = 'u32[]', space=smem, size = 0x4, offset = 0x4, fixed_abs, tag = 'smem constant byte address 0x4 - core index']
  #allocation1 [shape = 'u32[144,128]{1,0:T(1,128)}', space=vmem, size = 0x12000, scoped, tag = 'internal scratch']
  %s0 = inlined_call_operand.hbm [shape: f32[8,32], index: 0, kind: input, shape index: {}]
  %s1 = inlined_call_operand.vmem [shape: f32[1,32], index: 1, kind: input, shape index: {}]
  %s2 = inlined_call_operand.vmem [shape: f32[8,1], index: 2, kind: output, shape index: {}]
  %s3 = sld [smem:[#allocation0]]
  $region22: #{tpu_custom_call.1} parent=0
    _
  %s5 = ssub.s32 1, %s3
  %s6 = scalar_select 0, %s5, %s3
  $region1: #{tpu_custom_call.1} parent=0
    #allocation2 [shape = 'u8[4096]{0}', space=vmem, size = 0x1000, scoped, tag = 'input window, operand 0, single buffered']
    #allocation3 [shape = 's32[1]{0}', space=sflag, size = 0x4, scoped, tag = 'scoped memory for tpu_custom_call.1']
    %7 = vsyncpa [#allocation3], 0
    // Predicated region
    $region2: #{tpu_custom_call.1} parent=1 // pred_check
      _
    $region3: #{tpu_custom_call.1} parent=1 // pred_check_branch
      %9 = sbr.rel (0) target = $region5
    $region4: #{tpu_custom_call.1} parent=1 // pred_region
      %s11 = ssub.s32 128, 128
      %12 = vsyncadd [#allocation3], %s11
      %s14 = sshll.u32 [#allocation2], 4
      %s15 = int_to_ptr.vmem [resolvable:$true] %s14
      %17 = dma.hbm_to_vmem [thread:$0]  %s0, 128, %s15, [#allocation3]
    $region5: #{tpu_custom_call.1} parent=1 // pred_fallthru
      _
    // Predicated region
    $region6: #{tpu_custom_call.1} parent=1 // pred_check
      _
    $region7: #{tpu_custom_call.1} parent=1 // pred_check_branch
      %19 = sbr.rel (0) target = $region9
    $region8: #{tpu_custom_call.1} parent=1 // pred_region
      _
    $region9: #{tpu_custom_call.1} parent=1 // pred_fallthru
      _
    // Predicated region
    $region10: #{tpu_custom_call.1} parent=1 // pred_check
      _
    $region11: #{tpu_custom_call.1} parent=1 // pred_check_branch
      %21 = sbr.rel (0) target = $region13
    $region12: #{tpu_custom_call.1} parent=1 // pred_region
      %22 = dma.done [#allocation3], 128
    $region13: #{tpu_custom_call.1} parent=1 // pred_fallthru
      _
    %v23 = vld [vmem:[#allocation2] sm:$0xff]
    %v24 = vld [vmem:[%s1] sm:$0x1]
    %v26 = vlaneseq
    %v27 = vshrl.u32 %v26, 7
    %v28 = vsub.s32 0, %v27
    %v29 = vrot.slane %v24, %v28
    %v31 = vmul.f32 %v23, %v29
    %vm32 = vcmask 261120
    %v33 = vsel %vm32, %v31, 0.0
    %34 = vadd.xlane.f32.xlu0 %v33
    %v35 = vpop.xlane.xlu0 %34
    %vm36 = vcmask 7168
    %37 = vst.msk [vmem:[%s2] sm:$0xff] %vm36, %v35
    // Predicated region
    $region14: #{tpu_custom_call.1} parent=1 // pred_check
      _
    $region15: #{tpu_custom_call.1} parent=1 // pred_check_branch
      %39 = sbr.rel (0) target = $region17
    $region16: #{tpu_custom_call.1} parent=1 // pred_region
      _
    $region17: #{tpu_custom_call.1} parent=1 // pred_fallthru
      _
    // Predicated region
    $region18: #{tpu_custom_call.1} parent=1 // pred_check
      _
    $region19: #{tpu_custom_call.1} parent=1 // pred_check_branch
      %41 = sbr.rel (0) target = $region21
    $region20: #{tpu_custom_call.1} parent=1 // pred_region
      _
    $region21: #{tpu_custom_call.1} parent=1 // pred_fallthru
      _
    %42 = vsyncpa [#allocation3], 1

</llo_original>
